<compile_context>
chip_gen: v6e
topology: v6e:2x2x1
jax: 0.10.0
libtpu: 0.0.40
codegen_flags: <defaults>
</compile_context>

<pallas_src>
import jax
import jax.numpy as jnp
from jax.experimental import pallas as pl
from jax.experimental.pallas import tpu as pltpu

D_IN = 178
D_HID = 256
D_OUT = 5
D_OUT_PAD = 128          # output padded to a lane-dense 128-wide store
TB_MAX = 2048            # max rows per batch tile (sweepable)
TB_ALIGN = 16            # bf16-friendly sublane multiple for the output tile
VMEM_LIMIT_BYTES = 48 * 1024 * 1024


def _cdiv(a, b):
    return -(-a // b)


def _round_up(n, m):
    return ((n + m - 1) // m) * m


# ---------------------------------------------------------------------------
# Kernel: fused 5-layer MLP on one (TB, 178) batch tile.
# x f32 -> bf16 in-register; each dot accumulates f32 on the MXU; bias-add +
# ReLU in f32; final result stored as bf16 (lane-dense (TB, 128) tile).
# ---------------------------------------------------------------------------
def mlp_kernel(x_ref,
               w1_ref, b1_ref,
               w2_ref, b2_ref,
               w3_ref, b3_ref,
               w4_ref, b4_ref,
               w5_ref, b5_ref,
               out_ref):
    h = x_ref[...].astype(jnp.bfloat16)        # (TB, 178) f32 -> bf16 (no HBM copy)

    def hidden(h_bf16, w_ref, b_ref):
        acc = jnp.dot(h_bf16, w_ref[...], preferred_element_type=jnp.float32)
        acc = acc + b_ref[...]                 # f32 bias-add
        return jnp.maximum(acc, 0.0).astype(jnp.bfloat16)   # f32 ReLU -> bf16

    h = hidden(h, w1_ref, b1_ref)
    h = hidden(h, w2_ref, b2_ref)
    h = hidden(h, w3_ref, b3_ref)
    h = hidden(h, w4_ref, b4_ref)

    y = jnp.dot(h, w5_ref[...], preferred_element_type=jnp.float32) + b5_ref[...]
    out_ref[...] = y.astype(jnp.bfloat16)      # (TB, 128) bf16, lane-dense store


# ---------------------------------------------------------------------------
# Wrapper
# ---------------------------------------------------------------------------
@jax.jit
def my_mlp_forward(x, packed_params):
    """x: (B, 178) float32 -> (B, 5) float32."""
    B, f_in = x.shape
    assert f_in == D_IN
    w1, b1, w2, b2, w3, b3, w4, b4, w5, b5 = packed_params

    # Tile selection:
    #  * cap at ~B/2 so the grid has >=2 tiles once B is big (megacore / v7x)
    #  * cap at TB_MAX (VMEM / pipeline sweet spot)
    #  * adaptive size so batch padding is bounded to <TB_ALIGN rows per tile
    tb_cap = min(TB_MAX, max(TB_ALIGN, _round_up(_cdiv(B, 2), TB_ALIGN)))
    num_tiles = _cdiv(B, tb_cap)
    TB = _round_up(_cdiv(B, num_tiles), TB_ALIGN)
    Bp = num_tiles * TB

    x_pad = x if Bp == B else jnp.pad(x, ((0, Bp - B), (0, 0)))

    def tile_map(i):       # x / out move with the batch tile
        return (i, 0)

    def const_map(i):      # weights & biases: same block every grid step
        return (0, 0)

    in_specs = [
        pl.BlockSpec((TB, D_IN), tile_map),            # x  (f32, K=178 unpadded)
        pl.BlockSpec((D_IN, D_HID), const_map),        # w1 (178, 256) bf16
        pl.BlockSpec((1, D_HID), const_map),           # b1
        pl.BlockSpec((D_HID, D_HID), const_map),       # w2
        pl.BlockSpec((1, D_HID), const_map),           # b2
        pl.BlockSpec((D_HID, D_HID), const_map),       # w3
        pl.BlockSpec((1, D_HID), const_map),           # b3
        pl.BlockSpec((D_HID, D_HID), const_map),       # w4
        pl.BlockSpec((1, D_HID), const_map),           # b4
        pl.BlockSpec((D_HID, D_OUT_PAD), const_map),   # w5 (256, 128) bf16
        pl.BlockSpec((1, D_OUT_PAD), const_map),       # b5
    ]
    out_spec = pl.BlockSpec((TB, D_OUT_PAD), tile_map)

    y_pad = pl.pallas_call(
        mlp_kernel,
        out_shape=jax.ShapeDtypeStruct((Bp, D_OUT_PAD), jnp.bfloat16),
        grid_spec=pltpu.PrefetchScalarGridSpec(
            num_scalar_prefetch=0,
            grid=(num_tiles,),
            in_specs=in_specs,
            out_specs=out_spec,
        ),
        compiler_params=pltpu.CompilerParams(
            dimension_semantics=("parallel",),      # batch tiles across TCs (v7x)
            vmem_limit_bytes=VMEM_LIMIT_BYTES,      # big tiles safe on v5e/v7x
        ),
    )(x_pad, w1, b1, w2, b2, w3, b3, w4, b4, w5, b5)

    return y_pad[:B, :D_OUT].astype(jnp.float32)


# ---------------------------------------------------------------------------
# Parameter construction / packing
# ---------------------------------------------------------------------------
def init_linear(key, fan_in, fan_out):
    """Mimics torch.nn.Linear default init (uniform +-1/sqrt(fan_in)).
    Weight stored (in, out) so the kernel computes y = x @ W + b; bias (1, out)."""
    k_w, k_b = jax.random.split(key)
    bound = 1.0 / jnp.sqrt(jnp.float32(fan_in))
    w = jax.random.uniform(k_w, (fan_in, fan_out), jnp.float32, -bound, bound)
    b = jax.random.uniform(k_b, (1, fan_out), jnp.float32, -bound, bound)
    return w, b


def make_params(key):
    ks = jax.random.split(key, 5)
    return (
        init_linear(ks[0], D_IN, D_HID),
        init_linear(ks[1], D_HID, D_HID),
        init_linear(ks[2], D_HID, D_HID),
        init_linear(ks[3], D_HID, D_HID),
        init_linear(ks[4], D_HID, D_OUT),
    )


def prepare_params(params):
    """W1 kept unpadded (178, 256); W5/b5 zero-padded on N (5 -> 128).
    Weights bf16, biases f32. Padding is mathematically inert (sliced off)."""
    (w1, b1), (w2, b2), (w3, b3), (w4, b4), (w5, b5) = params

    w5p = jnp.zeros((D_HID, D_OUT_PAD), jnp.float32).at[:, :D_OUT].set(w5)
    b5p = jnp.zeros((1, D_OUT_PAD), jnp.float32).at[:, :D_OUT].set(b5)

    return (
        w1.astype(jnp.bfloat16), b1.astype(jnp.float32),
        w2.astype(jnp.bfloat16), b2.astype(jnp.float32),
        w3.astype(jnp.bfloat16), b3.astype(jnp.float32),
        w4.astype(jnp.bfloat16), b4.astype(jnp.float32),
        w5p.astype(jnp.bfloat16), b5p,
    )


# ---------------------------------------------------------------------------
# References
# ---------------------------------------------------------------------------
def reference_f32(x, params):
    """Pure f32 reference matching the PyTorch module."""
    h = x
    for i, (w, b) in enumerate(params):
        h = h @ w + b
        if i < len(params) - 1:
            h = jnp.maximum(h, 0.0)
    return h


def reference_kernel_scheme(x, packed_params):
    """Same bf16-weight / f32-accumulate scheme as the kernel (output left f32;
    the kernel's final bf16 store adds at most one extra bf16 rounding)."""
    w1, b1, w2, b2, w3, b3, w4, b4, w5, b5 = packed_params
    h = x.astype(jnp.bfloat16)
    for w, b in ((w1, b1), (w2, b2), (w3, b3), (w4, b4)):
        acc = jnp.dot(h, w, preferred_element_type=jnp.float32) + b
        h = jnp.maximum(acc, 0.0).astype(jnp.bfloat16)
    y = jnp.dot(h, w5, preferred_element_type=jnp.float32) + b5
    return y[:, :D_OUT]


if __name__ == "__main__":
    key = jax.random.PRNGKey(0)
    k_params, k_x1, k_x2 = jax.random.split(key, 3)

    params = make_params(k_params)
    packed = prepare_params(params)

    # Small single-tile batch and a multi-tile batch (exercises grid > 1).
    for bsz, kx in ((8, k_x1), (400, k_x2)):
        x = jax.random.normal(kx, (bsz, D_IN), jnp.float32)

        out = jax.block_until_ready(my_mlp_forward(x, packed))
        assert out.shape == (bsz, D_OUT)
        assert out.dtype == jnp.float32

        # Exact-scheme check (bf16 weights/activations, f32 accumulation);
        # tolerance absorbs the final bf16 store rounding + MXU accumulation
        # order differences.
        ref_k = reference_kernel_scheme(x, packed)
        assert jnp.allclose(out, ref_k, atol=1e-2, rtol=1e-2), \
            f"mismatch vs kernel-scheme reference (B={bsz})"

        # Loose check against the full-f32 PyTorch-equivalent forward.
        ref_f = reference_f32(x, params)
        assert jnp.allclose(out, ref_f, atol=5e-2, rtol=5e-2), \
            f"mismatch vs f32 reference (B={bsz})"

    print("KERNEL_OK")
</pallas_src>

<mosaic_0001>
module attributes {stable_mosaic.version = 11 : i64} {
  func.func @mlp_kernel(%arg0: i32, %arg1: memref<16x178xf32, #tpu.memory_space<vmem>>, %arg2: memref<178x256xbf16, #tpu.memory_space<vmem>>, %arg3: memref<1x256xf32, #tpu.memory_space<vmem>>, %arg4: memref<256x256xbf16, #tpu.memory_space<vmem>>, %arg5: memref<1x256xf32, #tpu.memory_space<vmem>>, %arg6: memref<256x256xbf16, #tpu.memory_space<vmem>>, %arg7: memref<1x256xf32, #tpu.memory_space<vmem>>, %arg8: memref<256x256xbf16, #tpu.memory_space<vmem>>, %arg9: memref<1x256xf32, #tpu.memory_space<vmem>>, %arg10: memref<256x128xbf16, #tpu.memory_space<vmem>>, %arg11: memref<1x128xf32, #tpu.memory_space<vmem>>, %arg12: memref<16x128xbf16, #tpu.memory_space<vmem>>) attributes {dimension_semantics = [#tpu.dimension_semantics<parallel>], iteration_bounds = array<i64: 1>, scalar_prefetch = 0 : i64, scratch_operands = 0 : i64, tpu.core_type = #tpu.core_type<tc>, window_params = [{transform_indices = @transform_0, window_bounds = array<i64: 16, 178>}, {pipeline_mode = #tpu.pipeline_mode<synchronous>, transform_indices = @transform_1, window_bounds = array<i64: 178, 256>}, {pipeline_mode = #tpu.pipeline_mode<synchronous>, transform_indices = @transform_2, window_bounds = array<i64: 1, 256>}, {pipeline_mode = #tpu.pipeline_mode<synchronous>, transform_indices = @transform_3, window_bounds = array<i64: 256, 256>}, {pipeline_mode = #tpu.pipeline_mode<synchronous>, transform_indices = @transform_4, window_bounds = array<i64: 1, 256>}, {pipeline_mode = #tpu.pipeline_mode<synchronous>, transform_indices = @transform_5, window_bounds = array<i64: 256, 256>}, {pipeline_mode = #tpu.pipeline_mode<synchronous>, transform_indices = @transform_6, window_bounds = array<i64: 1, 256>}, {pipeline_mode = #tpu.pipeline_mode<synchronous>, transform_indices = @transform_7, window_bounds = array<i64: 256, 256>}, {pipeline_mode = #tpu.pipeline_mode<synchronous>, transform_indices = @transform_8, window_bounds = array<i64: 1, 256>}, {pipeline_mode = #tpu.pipeline_mode<synchronous>, transform_indices = @transform_9, window_bounds = array<i64: 256, 128>}, {pipeline_mode = #tpu.pipeline_mode<synchronous>, transform_indices = @transform_10, window_bounds = array<i64: 1, 128>}, {transform_indices = @transform_11, window_bounds = array<i64: 16, 128>}]} {
    %c0 = arith.constant 0 : index
    %c0_0 = arith.constant 0 : index
    %0 = vector.load %arg1[%c0, %c0_0] : memref<16x178xf32, #tpu.memory_space<vmem>>, vector<16x178xf32>
    %1 = arith.truncf %0 : vector<16x178xf32> to vector<16x178xbf16>
    %c0_1 = arith.constant 0 : index
    %c0_2 = arith.constant 0 : index
    %2 = vector.load %arg2[%c0_1, %c0_2] : memref<178x256xbf16, #tpu.memory_space<vmem>>, vector<178x256xbf16>
    %cst = arith.constant dense<0.000000e+00> : vector<16x256xf32>
    %3 = tpu.matmul %1, %2, %cst {dimension_numbers = #tpu.dot_dimension_numbers<[1], [0], [0], [1], [0, 0, 1, 1], [], []>} : vector<16x178xbf16>, vector<178x256xbf16>, vector<16x256xf32> -> vector<16x256xf32>
    %c0_3 = arith.constant 0 : index
    %c0_4 = arith.constant 0 : index
    %4 = vector.load %arg3[%c0_3, %c0_4] : memref<1x256xf32, #tpu.memory_space<vmem>>, vector<1x256xf32>
    %5 = vector.broadcast %4 : vector<1x256xf32> to vector<16x256xf32>
    %6 = arith.addf %3, %5 : vector<16x256xf32>
    %cst_5 = arith.constant 0.000000e+00 : f32
    %7 = vector.broadcast %cst_5 : f32 to vector<16x256xf32>
    %8 = arith.maximumf %6, %7 : vector<16x256xf32>
    %9 = arith.truncf %8 : vector<16x256xf32> to vector<16x256xbf16>
    %c0_6 = arith.constant 0 : index
    %c0_7 = arith.constant 0 : index
    %10 = vector.load %arg4[%c0_6, %c0_7] : memref<256x256xbf16, #tpu.memory_space<vmem>>, vector<256x256xbf16>
    %cst_8 = arith.constant dense<0.000000e+00> : vector<16x256xf32>
    %11 = tpu.matmul %9, %10, %cst_8 {dimension_numbers = #tpu.dot_dimension_numbers<[1], [0], [0], [1], [0, 0, 1, 1], [], []>} : vector<16x256xbf16>, vector<256x256xbf16>, vector<16x256xf32> -> vector<16x256xf32>
    %c0_9 = arith.constant 0 : index
    %c0_10 = arith.constant 0 : index
    %12 = vector.load %arg5[%c0_9, %c0_10] : memref<1x256xf32, #tpu.memory_space<vmem>>, vector<1x256xf32>
    %13 = vector.broadcast %12 : vector<1x256xf32> to vector<16x256xf32>
    %14 = arith.addf %11, %13 : vector<16x256xf32>
    %cst_11 = arith.constant 0.000000e+00 : f32
    %15 = vector.broadcast %cst_11 : f32 to vector<16x256xf32>
    %16 = arith.maximumf %14, %15 : vector<16x256xf32>
    %17 = arith.truncf %16 : vector<16x256xf32> to vector<16x256xbf16>
    %c0_12 = arith.constant 0 : index
    %c0_13 = arith.constant 0 : index
    %18 = vector.load %arg6[%c0_12, %c0_13] : memref<256x256xbf16, #tpu.memory_space<vmem>>, vector<256x256xbf16>
    %cst_14 = arith.constant dense<0.000000e+00> : vector<16x256xf32>
    %19 = tpu.matmul %17, %18, %cst_14 {dimension_numbers = #tpu.dot_dimension_numbers<[1], [0], [0], [1], [0, 0, 1, 1], [], []>} : vector<16x256xbf16>, vector<256x256xbf16>, vector<16x256xf32> -> vector<16x256xf32>
    %c0_15 = arith.constant 0 : index
    %c0_16 = arith.constant 0 : index
    %20 = vector.load %arg7[%c0_15, %c0_16] : memref<1x256xf32, #tpu.memory_space<vmem>>, vector<1x256xf32>
    %21 = vector.broadcast %20 : vector<1x256xf32> to vector<16x256xf32>
    %22 = arith.addf %19, %21 : vector<16x256xf32>
    %cst_17 = arith.constant 0.000000e+00 : f32
    %23 = vector.broadcast %cst_17 : f32 to vector<16x256xf32>
    %24 = arith.maximumf %22, %23 : vector<16x256xf32>
    %25 = arith.truncf %24 : vector<16x256xf32> to vector<16x256xbf16>
    %c0_18 = arith.constant 0 : index
    %c0_19 = arith.constant 0 : index
    %26 = vector.load %arg8[%c0_18, %c0_19] : memref<256x256xbf16, #tpu.memory_space<vmem>>, vector<256x256xbf16>
    %cst_20 = arith.constant dense<0.000000e+00> : vector<16x256xf32>
    %27 = tpu.matmul %25, %26, %cst_20 {dimension_numbers = #tpu.dot_dimension_numbers<[1], [0], [0], [1], [0, 0, 1, 1], [], []>} : vector<16x256xbf16>, vector<256x256xbf16>, vector<16x256xf32> -> vector<16x256xf32>
    %c0_21 = arith.constant 0 : index
    %c0_22 = arith.constant 0 : index
    %28 = vector.load %arg9[%c0_21, %c0_22] : memref<1x256xf32, #tpu.memory_space<vmem>>, vector<1x256xf32>
    %29 = vector.broadcast %28 : vector<1x256xf32> to vector<16x256xf32>
    %30 = arith.addf %27, %29 : vector<16x256xf32>
    %cst_23 = arith.constant 0.000000e+00 : f32
    %31 = vector.broadcast %cst_23 : f32 to vector<16x256xf32>
    %32 = arith.maximumf %30, %31 : vector<16x256xf32>
    %33 = arith.truncf %32 : vector<16x256xf32> to vector<16x256xbf16>
    %c0_24 = arith.constant 0 : index
    %c0_25 = arith.constant 0 : index
    %34 = vector.load %arg10[%c0_24, %c0_25] : memref<256x128xbf16, #tpu.memory_space<vmem>>, vector<256x128xbf16>
    %cst_26 = arith.constant dense<0.000000e+00> : vector<16x128xf32>
    %35 = tpu.matmul %33, %34, %cst_26 {dimension_numbers = #tpu.dot_dimension_numbers<[1], [0], [0], [1], [0, 0, 1, 1], [], []>} : vector<16x256xbf16>, vector<256x128xbf16>, vector<16x128xf32> -> vector<16x128xf32>
    %c0_27 = arith.constant 0 : index
    %c0_28 = arith.constant 0 : index
    %36 = vector.load %arg11[%c0_27, %c0_28] : memref<1x128xf32, #tpu.memory_space<vmem>>, vector<1x128xf32>
    %37 = vector.broadcast %36 : vector<1x128xf32> to vector<16x128xf32>
    %38 = arith.addf %35, %37 : vector<16x128xf32>
    %39 = arith.truncf %38 : vector<16x128xf32> to vector<16x128xbf16>
    %c0_29 = arith.constant 0 : index
    %c0_30 = arith.constant 0 : index
    %40 = vector.load %arg12[%c0_29, %c0_30] : memref<16x128xbf16, #tpu.memory_space<vmem>>, vector<16x128xbf16>
    tpu.vector_store %arg12[%c0_29, %c0_30], %39 {strides = array<i32>} : memref<16x128xbf16, #tpu.memory_space<vmem>>, vector<16x128xbf16>,
    return
  }
  func.func @transform_0(%arg0: i32) -> (i32, i32) {
    %c0_i32 = arith.constant 0 : i32
    %c0_i32_0 = arith.constant 0 : i32
    return %arg0, %c0_i32 : i32, i32
  }
  func.func @transform_1(%arg0: i32) -> (i32, i32) {
    %c0_i32 = arith.constant 0 : i32
    %c0_i32_0 = arith.constant 0 : i32
    %c0_i32_1 = arith.constant 0 : i32
    return %c0_i32, %c0_i32_0 : i32, i32
  }
  func.func @transform_2(%arg0: i32) -> (i32, i32) {
    %c0_i32 = arith.constant 0 : i32
    %c0_i32_0 = arith.constant 0 : i32
    %c0_i32_1 = arith.constant 0 : i32
    return %c0_i32, %c0_i32_0 : i32, i32
  }
  func.func @transform_3(%arg0: i32) -> (i32, i32) {
    %c0_i32 = arith.constant 0 : i32
    %c0_i32_0 = arith.constant 0 : i32
    %c0_i32_1 = arith.constant 0 : i32
    return %c0_i32, %c0_i32_0 : i32, i32
  }
  func.func @transform_4(%arg0: i32) -> (i32, i32) {
    %c0_i32 = arith.constant 0 : i32
    %c0_i32_0 = arith.constant 0 : i32
    %c0_i32_1 = arith.constant 0 : i32
    return %c0_i32, %c0_i32_0 : i32, i32
  }
  func.func @transform_5(%arg0: i32) -> (i32, i32) {
    %c0_i32 = arith.constant 0 : i32
    %c0_i32_0 = arith.constant 0 : i32
    %c0_i32_1 = arith.constant 0 : i32
    return %c0_i32, %c0_i32_0 : i32, i32
  }
  func.func @transform_6(%arg0: i32) -> (i32, i32) {
    %c0_i32 = arith.constant 0 : i32
    %c0_i32_0 = arith.constant 0 : i32
    %c0_i32_1 = arith.constant 0 : i32
    return %c0_i32, %c0_i32_0 : i32, i32
  }
  func.func @transform_7(%arg0: i32) -> (i32, i32) {
    %c0_i32 = arith.constant 0 : i32
    %c0_i32_0 = arith.constant 0 : i32
    %c0_i32_1 = arith.constant 0 : i32
    return %c0_i32, %c0_i32_0 : i32, i32
  }
  func.func @transform_8(%arg0: i32) -> (i32, i32) {
    %c0_i32 = arith.constant 0 : i32
    %c0_i32_0 = arith.constant 0 : i32
    %c0_i32_1 = arith.constant 0 : i32
    return %c0_i32, %c0_i32_0 : i32, i32
  }
  func.func @transform_9(%arg0: i32) -> (i32, i32) {
    %c0_i32 = arith.constant 0 : i32
    %c0_i32_0 = arith.constant 0 : i32
    %c0_i32_1 = arith.constant 0 : i32
    return %c0_i32, %c0_i32_0 : i32, i32
  }
  func.func @transform_10(%arg0: i32) -> (i32, i32) {
    %c0_i32 = arith.constant 0 : i32
    %c0_i32_0 = arith.constant 0 : i32
    %c0_i32_1 = arith.constant 0 : i32
    return %c0_i32, %c0_i32_0 : i32, i32
  }
  func.func @transform_11(%arg0: i32) -> (i32, i32) {
    %c0_i32 = arith.constant 0 : i32
    %c0_i32_0 = arith.constant 0 : i32
    return %arg0, %c0_i32 : i32, i32
  }
}

</mosaic_0001>

<llo_original>
// kernel: my_mlp_forward.1
$region0: #{my_mlp_forward.1}
  #allocation0 [shape = 'u32[]', space=smem, size = 0x4, offset = 0x4, fixed_abs, tag = 'smem constant byte address 0x4 - core index']
  #allocation1 [shape = 'u32[144,128]{1,0:T(1,128)}', space=vmem, size = 0x12000, scoped, tag = 'internal scratch']
  %s0 = inlined_call_operand.vmem [shape: f32[16,178], index: 0, kind: input, shape index: {}]
  %s1 = inlined_call_operand.hbm [shape: bf16[178,256], index: 1, kind: input, shape index: {}]
  %s2 = inlined_call_operand.vmem [shape: f32[1,256], index: 2, kind: input, shape index: {}]
  %s3 = inlined_call_operand.hbm [shape: bf16[256,256], index: 3, kind: input, shape index: {}]
  %s4 = inlined_call_operand.vmem [shape: f32[1,256], index: 4, kind: input, shape index: {}]
  %s5 = inlined_call_operand.hbm [shape: bf16[256,256], index: 5, kind: input, shape index: {}]
  %s6 = inlined_call_operand.vmem [shape: f32[1,256], index: 6, kind: input, shape index: {}]
  %s7 = inlined_call_operand.hbm [shape: bf16[256,256], index: 7, kind: input, shape index: {}]
  %s8 = inlined_call_operand.vmem [shape: f32[1,256], index: 8, kind: input, shape index: {}]
  %s9 = inlined_call_operand.hbm [shape: bf16[256,128], index: 9, kind: input, shape index: {}]
  %s10 = inlined_call_operand.vmem [shape: f32[1,128], index: 10, kind: input, shape index: {}]
  %s11 = inlined_call_operand.vmem [shape: bf16[16,128], index: 11, kind: output, shape index: {}]
  %s12 = sld [smem:[#allocation0]]
  $region74: #{my_mlp_forward.1} parent=0
    _
  %s14 = ssub.s32 1, %s12
  %s15 = scalar_select 0, %s14, %s12
  $region1: #{my_mlp_forward.1} parent=0
    #allocation2 [shape = 'u8[94208]{0}', space=vmem, size = 0x17000, scoped, tag = 'input window, operand 1, single buffered']
    #allocation3 [shape = 's32[1]{0}', space=sflag, size = 0x4, scoped, tag = 'scoped memory for my_mlp_forward.1']
    #allocation4 [shape = 'u8[131072]{0}', space=vmem, size = 0x20000, scoped, tag = 'input window, operand 3, single buffered']
    #allocation5 [shape = 's32[1]{0}', space=sflag, size = 0x4, scoped, tag = 'scoped memory for my_mlp_forward.1']
    #allocation6 [shape = 'u8[131072]{0}', space=vmem, size = 0x20000, scoped, tag = 'input window, operand 5, single buffered']
    #allocation7 [shape = 'u8[131072]{0}', space=vmem, size = 0x20000, scoped, tag = 'input window, operand 7, single buffered']
    #allocation8 [shape = 's32[1]{0}', space=sflag, size = 0x4, scoped, tag = 'scoped memory for my_mlp_forward.1']
    #allocation9 [shape = 'u8[65536]{0}', space=vmem, size = 0x10000, scoped, tag = 'input window, operand 9, single buffered']
    %16 = vsyncpa [#allocation3], 0
    %17 = vsyncpa [#allocation5], 0
    %18 = vsyncpa [#allocation8], 0
    // Predicated region
    $region2: #{my_mlp_forward.1} parent=1 // pred_check
      _
    $region3: #{my_mlp_forward.1} parent=1 // pred_check_branch
      %20 = sbr.rel (0) target = $region5
    $region4: #{my_mlp_forward.1} parent=1 // pred_region
      _
    $region5: #{my_mlp_forward.1} parent=1 // pred_fallthru
      _
    // Predicated region
    $region6: #{my_mlp_forward.1} parent=1 // pred_check
      _
    $region7: #{my_mlp_forward.1} parent=1 // pred_check_branch
      %22 = sbr.rel (0) target = $region9
    $region8: #{my_mlp_forward.1} parent=1 // pred_region
      %s24 = ssub.s32 2944, 2944
      %25 = vsyncadd [#allocation3], %s24
      %s26 = sshll.u32 [#allocation2], 4
      %s27 = int_to_ptr.vmem [resolvable:$true] %s26
      %32 = dma.hbm_to_vmem [thread:$0]  %s1, 2944, %s27, [#allocation3], 128, 128, 8
    $region9: #{my_mlp_forward.1} parent=1 // pred_fallthru
      _
    // Predicated region
    $region10: #{my_mlp_forward.1} parent=1 // pred_check
      _
    $region11: #{my_mlp_forward.1} parent=1 // pred_check_branch
      %34 = sbr.rel (0) target = $region13
    $region12: #{my_mlp_forward.1} parent=1 // pred_region
      _
    $region13: #{my_mlp_forward.1} parent=1 // pred_fallthru
      _
    // Predicated region
    $region14: #{my_mlp_forward.1} parent=1 // pred_check
      _
    $region15: #{my_mlp_forward.1} parent=1 // pred_check_branch
      %36 = sbr.rel (0) target = $region17
    $region16: #{my_mlp_forward.1} parent=1 // pred_region
      %s38 = ssub.s32 4096, 4096
      %39 = vsyncadd [#allocation5], %s38
      %s40 = sshll.u32 [#allocation4], 4
      %s41 = int_to_ptr.vmem [resolvable:$true] %s40
      %46 = dma.hbm_to_vmem [thread:$0]  %s3, 4096, %s41, [#allocation5], 128, 128, 8
    $region17: #{my_mlp_forward.1} parent=1 // pred_fallthru
      _
    // Predicated region
    $region18: #{my_mlp_forward.1} parent=1 // pred_check
      _
    $region19: #{my_mlp_forward.1} parent=1 // pred_check_branch
      %48 = sbr.rel (0) target = $region21
    $region20: #{my_mlp_forward.1} parent=1 // pred_region
      _
    $region21: #{my_mlp_forward.1} parent=1 // pred_fallthru
      _
    // Predicated region
    $region22: #{my_mlp_forward.1} parent=1 // pred_check
      _
    $region23: #{my_mlp_forward.1} parent=1 // pred_check_branch
      %50 = sbr.rel (0) target = $region25
    $region24: #{my_mlp_forward.1} parent=1 // pred_region
      %s52 = ssub.s32 4096, 4096
      %53 = vsyncadd [#allocation5], %s52
      %s54 = sshll.u32 [#allocation6], 4
      %s55 = int_to_ptr.vmem [resolvable:$true] %s54
      %60 = dma.hbm_to_vmem [thread:$0]  %s5, 4096, %s55, [#allocation5], 128, 128, 8
    $region25: #{my_mlp_forward.1} parent=1 // pred_fallthru
      _
    // Predicated region
    $region26: #{my_mlp_forward.1} parent=1 // pred_check
      _
    $region27: #{my_mlp_forward.1} parent=1 // pred_check_branch
      %62 = sbr.rel (0) target = $region29
    $region28: #{my_mlp_forward.1} parent=1 // pred_region
      _
    $region29: #{my_mlp_forward.1} parent=1 // pred_fallthru
      _
    // Predicated region
    $region30: #{my_mlp_forward.1} parent=1 // pred_check
      _
    $region31: #{my_mlp_forward.1} parent=1 // pred_check_branch
      %64 = sbr.rel (0) target = $region33
    $region32: #{my_mlp_forward.1} parent=1 // pred_region
      %s66 = ssub.s32 4096, 4096
      %67 = vsyncadd [#allocation8], %s66
      %s68 = sshll.u32 [#allocation7], 4
      %s69 = int_to_ptr.vmem [resolvable:$true] %s68
      %74 = dma.hbm_to_vmem [thread:$0]  %s7, 4096, %s69, [#allocation8], 128, 128, 8
    $region33: #{my_mlp_forward.1} parent=1 // pred_fallthru
      _
    // Predicated region
    $region34: #{my_mlp_forward.1} parent=1 // pred_check
      _
    $region35: #{my_mlp_forward.1} parent=1 // pred_check_branch
      %76 = sbr.rel (0) target = $region37
    $region36: #{my_mlp_forward.1} parent=1 // pred_region
      _
    $region37: #{my_mlp_forward.1} parent=1 // pred_fallthru
      _
    // Predicated region
    $region38: #{my_mlp_forward.1} parent=1 // pred_check
      _
    $region39: #{my_mlp_forward.1} parent=1 // pred_check_branch
      %78 = sbr.rel (0) target = $region41
    $region40: #{my_mlp_forward.1} parent=1 // pred_region
      %s80 = ssub.s32 2048, 2048
      %81 = vsyncadd [#allocation8], %s80
      %s82 = sshll.u32 [#allocation9], 4
      %s83 = int_to_ptr.vmem [resolvable:$true] %s82
      %88 = dma.hbm_to_vmem [thread:$0]  %s9, 2048, %s83, [#allocation8], 64, 64, 4
    $region41: #{my_mlp_forward.1} parent=1 // pred_fallthru
      _
    // Predicated region
    $region42: #{my_mlp_forward.1} parent=1 // pred_check
      _
    $region43: #{my_mlp_forward.1} parent=1 // pred_check_branch
      %90 = sbr.rel (0) target = $region45
    $region44: #{my_mlp_forward.1} parent=1 // pred_region
      _
    $region45: #{my_mlp_forward.1} parent=1 // pred_fallthru
      _
    // Predicated region
    $region46: #{my_mlp_forward.1} parent=1 // pred_check
      _
    $region47: #{my_mlp_forward.1} parent=1 // pred_check_branch
      %92 = sbr.rel (0) target = $region49
    $region48: #{my_mlp_forward.1} parent=1 // pred_region
      %93 = dma.done [#allocation3], 2944
    $region49: #{my_mlp_forward.1} parent=1 // pred_fallthru
      _
    // Predicated region
    $region50: #{my_mlp_forward.1} parent=1 // pred_check
      _
    $region51: #{my_mlp_forward.1} parent=1 // pred_check_branch
      %95 = sbr.rel (0) target = $region53
    $region52: #{my_mlp_forward.1} parent=1 // pred_region
      %96 = dma.done [#allocation5], 4096
    $region53: #{my_mlp_forward.1} parent=1 // pred_fallthru
      _
    // Predicated region
    $region54: #{my_mlp_forward.1} parent=1 // pred_check
      _
    $region55: #{my_mlp_forward.1} parent=1 // pred_check_branch
      %98 = sbr.rel (0) target = $region57
    $region56: #{my_mlp_forward.1} parent=1 // pred_region
      %99 = dma.done [#allocation5], 4096
    $region57: #{my_mlp_forward.1} parent=1 // pred_fallthru
      _
    // Predicated region
    $region58: #{my_mlp_forward.1} parent=1 // pred_check
      _
    $region59: #{my_mlp_forward.1} parent=1 // pred_check_branch
      %101 = sbr.rel (0) target = $region61
    $region60: #{my_mlp_forward.1} parent=1 // pred_region
      %102 = dma.done [#allocation8], 4096
    $region61: #{my_mlp_forward.1} parent=1 // pred_fallthru
      _
    // Predicated region
    $region62: #{my_mlp_forward.1} parent=1 // pred_check
      _
    $region63: #{my_mlp_forward.1} parent=1 // pred_check_branch
      %104 = sbr.rel (0) target = $region65
    $region64: #{my_mlp_forward.1} parent=1 // pred_region
      %105 = dma.done [#allocation8], 2048
    $region65: #{my_mlp_forward.1} parent=1 // pred_fallthru
      _
    %v107 = vld [vmem:[%s0] sm:$0xff]
    %v108 = vld [vmem:[%s0 + $0x8] sm:$0xff]
    %v109 = vld [vmem:[%s0 + $0x10] sm:$0xff]
    %v110 = vld [vmem:[%s0 + $0x18] sm:$0xff]
    %v111 = vpack.c.bf16 %v109, %v107
    %v112 = vpack.c.bf16 %v110, %v108
    %v113 = vld [vmem:[#allocation2] sm:$0xff]
    %v114 = vld [vmem:[#allocation2 + $0x8] sm:$0xff]
    %v115 = vld [vmem:[#allocation2 + $0x10] sm:$0xff]
    %v116 = vld [vmem:[#allocation2 + $0x18] sm:$0xff]
    %v117 = vld [vmem:[#allocation2 + $0x20] sm:$0xff]
    %v118 = vld [vmem:[#allocation2 + $0x28] sm:$0xff]
    %v119 = vld [vmem:[#allocation2 + $0x30] sm:$0xff]
    %v120 = vld [vmem:[#allocation2 + $0x38] sm:$0xff]
    %v121 = vld [vmem:[#allocation2 + $0x40] sm:$0xff]
    %v122 = vld [vmem:[#allocation2 + $0x48] sm:$0xff]
    %v123 = vld [vmem:[#allocation2 + $0x50] sm:$0xff]
    %v124 = vld [vmem:[#allocation2 + $0x58] sm:$0xff]
    %v125 = vld [vmem:[#allocation2 + $0x60] sm:$0xff]
    %v126 = vld [vmem:[#allocation2 + $0x68] sm:$0xff]
    %v127 = vld [vmem:[#allocation2 + $0x70] sm:$0xff]
    %v128 = vld [vmem:[#allocation2 + $0x78] sm:$0xff]
    %v129 = vld [vmem:[#allocation2 + $0x80] sm:$0xff]
    %v130 = vld [vmem:[#allocation2 + $0x88] sm:$0xff]
    %v131 = vld [vmem:[#allocation2 + $0x90] sm:$0xff]
    %v132 = vld [vmem:[#allocation2 + $0x98] sm:$0xff]
    %v133 = vld [vmem:[#allocation2 + $0xa0] sm:$0xff]
    %v134 = vld [vmem:[#allocation2 + $0xa8] sm:$0xff]
    %v135 = vld [vmem:[#allocation2 + $0xb0] sm:$0x11]
    %v136 = vld [vmem:[%s2] sm:$0x3]
    %v138 = vlaneseq
    %v139 = vshrl.u32 %v138, 7
    %v140 = vsub.s32 0, %v139
    %v141 = vrot.slane %v136, %v140
    %v142 = vlaneseq
    %v143 = vshrl.u32 %v142, 7
    %v144 = vsub.s32 1, %v143
    %v145 = vrot.slane %v136, %v144
    %v171 = vunpack.c.l.b16 %v113
    %v172 = vunpack.c.h.b16 %v113
    %v173 = vunpack.c.l.b16 %v114
    %v174 = vunpack.c.h.b16 %v114
    %v175 = vunpack.c.l.b16 %v115
    %v176 = vunpack.c.h.b16 %v115
    %v177 = vunpack.c.l.b16 %v116
    %v178 = vunpack.c.h.b16 %v116
    %v179 = vunpack.c.l.b16 %v117
    %v180 = vunpack.c.h.b16 %v117
    %v181 = vunpack.c.l.b16 %v118
    %v182 = vunpack.c.h.b16 %v118
    %v183 = vunpack.c.l.b16 %v119
    %v184 = vunpack.c.h.b16 %v119
    %v185 = vunpack.c.l.b16 %v120
    %v186 = vunpack.c.h.b16 %v120
    %v187 = vunpack.c.l.b16 %v121
    %v188 = vunpack.c.h.b16 %v121
    %v189 = vunpack.c.l.b16 %v122
    %v190 = vunpack.c.h.b16 %v122
    %v191 = vunpack.c.l.b16 %v123
    %v192 = vunpack.c.h.b16 %v123
    %v193 = vunpack.c.l.b16 %v124
    %v194 = vunpack.c.h.b16 %v124
    %v195 = vunpack.c.l.b16 %v125
    %v196 = vunpack.c.h.b16 %v125
    %v197 = vunpack.c.l.b16 %v126
    %v198 = vunpack.c.h.b16 %v126
    %v199 = vunpack.c.l.b16 %v127
    %v200 = vunpack.c.h.b16 %v127
    %v201 = vunpack.c.l.b16 %v128
    %v202 = vunpack.c.h.b16 %v128
    %v203 = vunpack.c.l.b16 %v129
    %v204 = vunpack.c.h.b16 %v129
    %v205 = vunpack.c.l.b16 %v130
    %v206 = vunpack.c.h.b16 %v130
    %v207 = vunpack.c.l.b16 %v131
    %v208 = vunpack.c.h.b16 %v131
    %v209 = vunpack.c.l.b16 %v132
    %v210 = vunpack.c.h.b16 %v132
    %v211 = vunpack.c.l.b16 %v133
    %v212 = vunpack.c.h.b16 %v133
    %v213 = vunpack.c.l.b16 %v134
    %v214 = vunpack.c.h.b16 %v134
    %v215 = vunpack.c.l.b16 %v135
    %v216 = vunpack.c.h.b16 %v135
    %v217 = vpack.c.b16 %v173, %v171
    %v218 = vpack.c.b16 %v174, %v172
    %v219 = vpack.c.b16 %v177, %v175
    %v220 = vpack.c.b16 %v178, %v176
    %v221 = vpack.c.b16 %v181, %v179
    %v222 = vpack.c.b16 %v182, %v180
    %v223 = vpack.c.b16 %v185, %v183
    %v224 = vpack.c.b16 %v186, %v184
    %v225 = vpack.c.b16 %v189, %v187
    %v226 = vpack.c.b16 %v190, %v188
    %v227 = vpack.c.b16 %v193, %v191
    %v228 = vpack.c.b16 %v194, %v192
    %v229 = vpack.c.b16 %v197, %v195
    %v230 = vpack.c.b16 %v198, %v196
    %v231 = vpack.c.b16 %v201, %v199
    %v232 = vpack.c.b16 %v202, %v200
    %v233 = vpack.c.b16 %v205, %v203
    %v234 = vpack.c.b16 %v206, %v204
    %v235 = vpack.c.b16 %v209, %v207
    %v236 = vpack.c.b16 %v210, %v208
    %v237 = vpack.c.b16 %v213, %v211
    %v238 = vpack.c.b16 %v214, %v212
    %v239 = vpack.c.b16 %v215, %v215
    %v240 = vpack.c.b16 %v216, %v216
    %vm263 = vcmask 408576
    %v265 = vsel %vm263, %v112, 0
    %vm267 = vcmask 1040384
    %v269 = vsel %vm267, %v239, 0
    %v272 = vsel %vm267, %v240, 0
    %274 = vmatprep.subr.bf16.mxu0 %v232
    %275 = vmatpush1.bf16.msra.mxu0 %v231
    %276 = vmatprep.subr.bf16.mxu0 %v230
    %277 = vmatpush1.bf16.msra.mxu0 %v229
    %278 = vmatprep.subr.bf16.mxu0 %v228
    %279 = vmatpush1.bf16.msra.mxu0 %v227
    %280 = vmatprep.subr.bf16.mxu0 %v226
    %281 = vmatpush1.bf16.msra.mxu0 %v225
    %282 = vmatprep.subr.bf16.mxu0 %v224
    %283 = vmatpush1.bf16.msra.mxu0 %v223
    %284 = vmatprep.subr.bf16.mxu0 %v222
    %285 = vmatpush1.bf16.msra.mxu0 %v221
    %286 = vmatprep.subr.bf16.mxu0 %v220
    %287 = vmatpush1.bf16.msra.mxu0 %v219
    %288 = vmatprep.subr.bf16.mxu0 %v218
    %289 = vmatpush1.bf16.msra.mxu0 %v217
    %290 = vmatprep.subr.bf16.mxu0 0
    %291 = vmatpush2.bf16.msra.mxu0 0
    %292 = vmatprep.subr.bf16.mxu0 0
    %293 = vmatpush2.bf16.msra.mxu0 0
    %294 = vmatprep.subr.bf16.mxu0 0
    %295 = vmatpush2.bf16.msra.mxu0 0
    %296 = vmatprep.subr.bf16.mxu0 0
    %297 = vmatpush2.bf16.msra.mxu0 0
    %298 = vmatprep.subr.bf16.mxu0 %v272
    %299 = vmatpush2.bf16.msra.mxu0 %v269
    %300 = vmatprep.subr.bf16.mxu0 %v238
    %301 = vmatpush2.bf16.msra.mxu0 %v237
    %302 = vmatprep.subr.bf16.mxu0 %v236
    %303 = vmatpush2.bf16.msra.mxu0 %v235
    %304 = vmatprep.subr.bf16.mxu0 %v234
    %305 = vmatpush2.bf16.msra.mxu0 %v233
    %306 = vmatprep.mubr.bf16.mxu0 %v265
    %307 = vmatmul.mubr.bf16.gmra.mxu0 %v111
    %v308 = vpop.f32.mrf.mxu0
    %v309 = vadd.f32 %v141, %v308
    %v310 = vpop.f32.mrf.mxu0
    %v311 = vadd.f32 %v145, %v310
    %v312 = vpop.f32.mrf.mxu0
    %v313 = vadd.f32 %v141, %v312
    %v314 = vpop.f32.mrf.mxu0
    %v315 = vadd.f32 %v145, %v314
    %316 = vdwg.mxu0
    %v317 = vmax.f32 %v309, 0.0
    %v318 = vmax.f32 %v311, 0.0
    %v319 = vmax.f32 %v313, 0.0
    %v320 = vmax.f32 %v315, 0.0
    %v321 = vpack.c.bf16 %v319, %v317
    %v322 = vpack.c.bf16 %v320, %v318
    %v323 = vld [vmem:[#allocation4] sm:$0xff]
    %v324 = vld [vmem:[#allocation4 + $0x8] sm:$0xff]
    %v325 = vld [vmem:[#allocation4 + $0x10] sm:$0xff]
    %v326 = vld [vmem:[#allocation4 + $0x18] sm:$0xff]
    %v327 = vld [vmem:[#allocation4 + $0x20] sm:$0xff]
    %v328 = vld [vmem:[#allocation4 + $0x28] sm:$0xff]
    %v329 = vld [vmem:[#allocation4 + $0x30] sm:$0xff]
    %v330 = vld [vmem:[#allocation4 + $0x38] sm:$0xff]
    %v331 = vld [vmem:[#allocation4 + $0x40] sm:$0xff]
    %v332 = vld [vmem:[#allocation4 + $0x48] sm:$0xff]
    %v333 = vld [vmem:[#allocation4 + $0x50] sm:$0xff]
    %v334 = vld [vmem:[#allocation4 + $0x58] sm:$0xff]
    %v335 = vld [vmem:[#allocation4 + $0x60] sm:$0xff]
    %v336 = vld [vmem:[#allocation4 + $0x68] sm:$0xff]
    %v337 = vld [vmem:[#allocation4 + $0x70] sm:$0xff]
    %v338 = vld [vmem:[#allocation4 + $0x78] sm:$0xff]
    %v339 = vld [vmem:[#allocation4 + $0x80] sm:$0xff]
    %v340 = vld [vmem:[#allocation4 + $0x88] sm:$0xff]
    %v341 = vld [vmem:[#allocation4 + $0x90] sm:$0xff]
    %v342 = vld [vmem:[#allocation4 + $0x98] sm:$0xff]
    %v343 = vld [vmem:[#allocation4 + $0xa0] sm:$0xff]
    %v344 = vld [vmem:[#allocation4 + $0xa8] sm:$0xff]
    %v345 = vld [vmem:[#allocation4 + $0xb0] sm:$0xff]
    %v346 = vld [vmem:[#allocation4 + $0xb8] sm:$0xff]
    %v347 = vld [vmem:[#allocation4 + $0xc0] sm:$0xff]
    %v348 = vld [vmem:[#allocation4 + $0xc8] sm:$0xff]
    %v349 = vld [vmem:[#allocation4 + $0xd0] sm:$0xff]
    %v350 = vld [vmem:[#allocation4 + $0xd8] sm:$0xff]
    %v351 = vld [vmem:[#allocation4 + $0xe0] sm:$0xff]
    %v352 = vld [vmem:[#allocation4 + $0xe8] sm:$0xff]
    %v353 = vld [vmem:[#allocation4 + $0xf0] sm:$0xff]
    %v354 = vld [vmem:[#allocation4 + $0xf8] sm:$0xff]
    %v355 = vld [vmem:[%s4] sm:$0x3]
    %v357 = vlaneseq
    %v358 = vshrl.u32 %v357, 7
    %v359 = vsub.s32 0, %v358
    %v360 = vrot.slane %v355, %v359
    %v361 = vlaneseq
    %v362 = vshrl.u32 %v361, 7
    %v363 = vsub.s32 1, %v362
    %v364 = vrot.slane %v355, %v363
    %v399 = vunpack.c.l.b16 %v323
    %v400 = vunpack.c.h.b16 %v323
    %v401 = vunpack.c.l.b16 %v324
    %v402 = vunpack.c.h.b16 %v324
    %v403 = vunpack.c.l.b16 %v325
    %v404 = vunpack.c.h.b16 %v325
    %v405 = vunpack.c.l.b16 %v326
    %v406 = vunpack.c.h.b16 %v326
    %v407 = vunpack.c.l.b16 %v327
    %v408 = vunpack.c.h.b16 %v327
    %v409 = vunpack.c.l.b16 %v328
    %v410 = vunpack.c.h.b16 %v328
    %v411 = vunpack.c.l.b16 %v329
    %v412 = vunpack.c.h.b16 %v329
    %v413 = vunpack.c.l.b16 %v330
    %v414 = vunpack.c.h.b16 %v330
    %v415 = vunpack.c.l.b16 %v331
    %v416 = vunpack.c.h.b16 %v331
    %v417 = vunpack.c.l.b16 %v332
    %v418 = vunpack.c.h.b16 %v332
    %v419 = vunpack.c.l.b16 %v333
    %v420 = vunpack.c.h.b16 %v333
    %v421 = vunpack.c.l.b16 %v334
    %v422 = vunpack.c.h.b16 %v334
    %v423 = vunpack.c.l.b16 %v335
    %v424 = vunpack.c.h.b16 %v335
    %v425 = vunpack.c.l.b16 %v336
    %v426 = vunpack.c.h.b16 %v336
    %v427 = vunpack.c.l.b16 %v337
    %v428 = vunpack.c.h.b16 %v337
    %v429 = vunpack.c.l.b16 %v338
    %v430 = vunpack.c.h.b16 %v338
    %v431 = vunpack.c.l.b16 %v339
    %v432 = vunpack.c.h.b16 %v339
    %v433 = vunpack.c.l.b16 %v340
    %v434 = vunpack.c.h.b16 %v340
    %v435 = vunpack.c.l.b16 %v341
    %v436 = vunpack.c.h.b16 %v341
    %v437 = vunpack.c.l.b16 %v342
    %v438 = vunpack.c.h.b16 %v342
    %v439 = vunpack.c.l.b16 %v343
    %v440 = vunpack.c.h.b16 %v343
    %v441 = vunpack.c.l.b16 %v344
    %v442 = vunpack.c.h.b16 %v344
    %v443 = vunpack.c.l.b16 %v345
    %v444 = vunpack.c.h.b16 %v345
    %v445 = vunpack.c.l.b16 %v346
    %v446 = vunpack.c.h.b16 %v346
    %v447 = vunpack.c.l.b16 %v347
    %v448 = vunpack.c.h.b16 %v347
    %v449 = vunpack.c.l.b16 %v348
    %v450 = vunpack.c.h.b16 %v348
    %v451 = vunpack.c.l.b16 %v349
    %v452 = vunpack.c.h.b16 %v349
    %v453 = vunpack.c.l.b16 %v350
    %v454 = vunpack.c.h.b16 %v350
    %v455 = vunpack.c.l.b16 %v351
    %v456 = vunpack.c.h.b16 %v351
    %v457 = vunpack.c.l.b16 %v352
    %v458 = vunpack.c.h.b16 %v352
    %v459 = vunpack.c.l.b16 %v353
    %v460 = vunpack.c.h.b16 %v353
    %v461 = vunpack.c.l.b16 %v354
    %v462 = vunpack.c.h.b16 %v354
    %v463 = vpack.c.b16 %v401, %v399
    %v464 = vpack.c.b16 %v402, %v400
    %v465 = vpack.c.b16 %v405, %v403
    %v466 = vpack.c.b16 %v406, %v404
    %v467 = vpack.c.b16 %v409, %v407
    %v468 = vpack.c.b16 %v410, %v408
    %v469 = vpack.c.b16 %v413, %v411
    %v470 = vpack.c.b16 %v414, %v412
    %v471 = vpack.c.b16 %v417, %v415
    %v472 = vpack.c.b16 %v418, %v416
    %v473 = vpack.c.b16 %v421, %v419
    %v474 = vpack.c.b16 %v422, %v420
    %v475 = vpack.c.b16 %v425, %v423
    %v476 = vpack.c.b16 %v426, %v424
    %v477 = vpack.c.b16 %v429, %v427
    %v478 = vpack.c.b16 %v430, %v428
    %v479 = vpack.c.b16 %v433, %v431
    %v480 = vpack.c.b16 %v434, %v432
    %v481 = vpack.c.b16 %v437, %v435
    %v482 = vpack.c.b16 %v438, %v436
    %v483 = vpack.c.b16 %v441, %v439
    %v484 = vpack.c.b16 %v442, %v440
    %v485 = vpack.c.b16 %v445, %v443
    %v486 = vpack.c.b16 %v446, %v444
    %v487 = vpack.c.b16 %v449, %v447
    %v488 = vpack.c.b16 %v450, %v448
    %v489 = vpack.c.b16 %v453, %v451
    %v490 = vpack.c.b16 %v454, %v452
    %v491 = vpack.c.b16 %v457, %v455
    %v492 = vpack.c.b16 %v458, %v456
    %v493 = vpack.c.b16 %v461, %v459
    %v494 = vpack.c.b16 %v462, %v460
    %527 = vmatprep.subr.bf16.mxu0 %v478
    %528 = vmatpush1.bf16.msra.mxu0 %v477
    %529 = vmatprep.subr.bf16.mxu0 %v476
    %530 = vmatpush1.bf16.msra.mxu0 %v475
    %531 = vmatprep.subr.bf16.mxu0 %v474
    %532 = vmatpush1.bf16.msra.mxu0 %v473
    %533 = vmatprep.subr.bf16.mxu0 %v472
    %534 = vmatpush1.bf16.msra.mxu0 %v471
    %535 = vmatprep.subr.bf16.mxu0 %v470
    %536 = vmatpush1.bf16.msra.mxu0 %v469
    %537 = vmatprep.subr.bf16.mxu0 %v468
    %538 = vmatpush1.bf16.msra.mxu0 %v467
    %539 = vmatprep.subr.bf16.mxu0 %v466
    %540 = vmatpush1.bf16.msra.mxu0 %v465
    %541 = vmatprep.subr.bf16.mxu0 %v464
    %542 = vmatpush1.bf16.msra.mxu0 %v463
    %543 = vmatprep.subr.bf16.mxu0 %v494
    %544 = vmatpush2.bf16.msra.mxu0 %v493
    %545 = vmatprep.subr.bf16.mxu0 %v492
    %546 = vmatpush2.bf16.msra.mxu0 %v491
    %547 = vmatprep.subr.bf16.mxu0 %v490
    %548 = vmatpush2.bf16.msra.mxu0 %v489
    %549 = vmatprep.subr.bf16.mxu0 %v488
    %550 = vmatpush2.bf16.msra.mxu0 %v487
    %551 = vmatprep.subr.bf16.mxu0 %v486
    %552 = vmatpush2.bf16.msra.mxu0 %v485
    %553 = vmatprep.subr.bf16.mxu0 %v484
    %554 = vmatpush2.bf16.msra.mxu0 %v483
    %555 = vmatprep.subr.bf16.mxu0 %v482
    %556 = vmatpush2.bf16.msra.mxu0 %v481
    %557 = vmatprep.subr.bf16.mxu0 %v480
    %558 = vmatpush2.bf16.msra.mxu0 %v479
    %559 = vmatprep.mubr.bf16.mxu0 %v322
    %560 = vmatmul.mubr.bf16.gmra.mxu0 %v321
    %v561 = vpop.f32.mrf.mxu0
    %v562 = vadd.f32 %v360, %v561
    %v563 = vpop.f32.mrf.mxu0
    %v564 = vadd.f32 %v364, %v563
    %v565 = vpop.f32.mrf.mxu0
    %v566 = vadd.f32 %v360, %v565
    %v567 = vpop.f32.mrf.mxu0
    %v568 = vadd.f32 %v364, %v567
    %569 = vdwg.mxu0
    %v570 = vmax.f32 %v562, 0.0
    %v571 = vmax.f32 %v564, 0.0
    %v572 = vmax.f32 %v566, 0.0
    %v573 = vmax.f32 %v568, 0.0
    %v574 = vpack.c.bf16 %v572, %v570
    %v575 = vpack.c.bf16 %v573, %v571
    %v576 = vld [vmem:[#allocation6] sm:$0xff]
    %v577 = vld [vmem:[#allocation6 + $0x8] sm:$0xff]
    %v578 = vld [vmem:[#allocation6 + $0x10] sm:$0xff]
    %v579 = vld [vmem:[#allocation6 + $0x18] sm:$0xff]
    %v580 = vld [vmem:[#allocation6 + $0x20] sm:$0xff]
    %v581 = vld [vmem:[#allocation6 + $0x28] sm:$0xff]
    %v582 = vld [vmem:[#allocation6 + $0x30] sm:$0xff]
    %v583 = vld [vmem:[#allocation6 + $0x38] sm:$0xff]
    %v584 = vld [vmem:[#allocation6 + $0x40] sm:$0xff]
    %v585 = vld [vmem:[#allocation6 + $0x48] sm:$0xff]
    %v586 = vld [vmem:[#allocation6 + $0x50] sm:$0xff]
    %v587 = vld [vmem:[#allocation6 + $0x58] sm:$0xff]
    %v588 = vld [vmem:[#allocation6 + $0x60] sm:$0xff]
    %v589 = vld [vmem:[#allocation6 + $0x68] sm:$0xff]
    %v590 = vld [vmem:[#allocation6 + $0x70] sm:$0xff]
    %v591 = vld [vmem:[#allocation6 + $0x78] sm:$0xff]
    %v592 = vld [vmem:[#allocation6 + $0x80] sm:$0xff]
    %v593 = vld [vmem:[#allocation6 + $0x88] sm:$0xff]
    %v594 = vld [vmem:[#allocation6 + $0x90] sm:$0xff]
    %v595 = vld [vmem:[#allocation6 + $0x98] sm:$0xff]
    %v596 = vld [vmem:[#allocation6 + $0xa0] sm:$0xff]
    %v597 = vld [vmem:[#allocation6 + $0xa8] sm:$0xff]
    %v598 = vld [vmem:[#allocation6 + $0xb0] sm:$0xff]
    %v599 = vld [vmem:[#allocation6 + $0xb8] sm:$0xff]
    %v600 = vld [vmem:[#allocation6 + $0xc0] sm:$0xff]
    %v601 = vld [vmem:[#allocation6 + $0xc8] sm:$0xff]
    %v602 = vld [vmem:[#allocation6 + $0xd0] sm:$0xff]
    %v603 = vld [vmem:[#allocation6 + $0xd8] sm:$0xff]
    %v604 = vld [vmem:[#allocation6 + $0xe0] sm:$0xff]
    %v605 = vld [vmem:[#allocation6 + $0xe8] sm:$0xff]
    %v606 = vld [vmem:[#allocation6 + $0xf0] sm:$0xff]
    %v607 = vld [vmem:[#allocation6 + $0xf8] sm:$0xff]
    %v608 = vld [vmem:[%s6] sm:$0x3]
    %v610 = vlaneseq
    %v611 = vshrl.u32 %v610, 7
    %v612 = vsub.s32 0, %v611
    %v613 = vrot.slane %v608, %v612
    %v614 = vlaneseq
    %v615 = vshrl.u32 %v614, 7
    %v616 = vsub.s32 1, %v615
    %v617 = vrot.slane %v608, %v616
    %v652 = vunpack.c.l.b16 %v576
    %v653 = vunpack.c.h.b16 %v576
    %v654 = vunpack.c.l.b16 %v577
    %v655 = vunpack.c.h.b16 %v577
    %v656 = vunpack.c.l.b16 %v578
    %v657 = vunpack.c.h.b16 %v578
    %v658 = vunpack.c.l.b16 %v579
    %v659 = vunpack.c.h.b16 %v579
    %v660 = vunpack.c.l.b16 %v580
    %v661 = vunpack.c.h.b16 %v580
    %v662 = vunpack.c.l.b16 %v581
    %v663 = vunpack.c.h.b16 %v581
    %v664 = vunpack.c.l.b16 %v582
    %v665 = vunpack.c.h.b16 %v582
    %v666 = vunpack.c.l.b16 %v583
    %v667 = vunpack.c.h.b16 %v583
    %v668 = vunpack.c.l.b16 %v584
    %v669 = vunpack.c.h.b16 %v584
    %v670 = vunpack.c.l.b16 %v585
    %v671 = vunpack.c.h.b16 %v585
    %v672 = vunpack.c.l.b16 %v586
    %v673 = vunpack.c.h.b16 %v586
    %v674 = vunpack.c.l.b16 %v587
    %v675 = vunpack.c.h.b16 %v587
    %v676 = vunpack.c.l.b16 %v588
    %v677 = vunpack.c.h.b16 %v588
    %v678 = vunpack.c.l.b16 %v589
    %v679 = vunpack.c.h.b16 %v589
    %v680 = vunpack.c.l.b16 %v590
    %v681 = vunpack.c.h.b16 %v590
    %v682 = vunpack.c.l.b16 %v591
    %v683 = vunpack.c.h.b16 %v591
    %v684 = vunpack.c.l.b16 %v592
    %v685 = vunpack.c.h.b16 %v592
    %v686 = vunpack.c.l.b16 %v593
    %v687 = vunpack.c.h.b16 %v593
    %v688 = vunpack.c.l.b16 %v594
    %v689 = vunpack.c.h.b16 %v594
    %v690 = vunpack.c.l.b16 %v595
    %v691 = vunpack.c.h.b16 %v595
    %v692 = vunpack.c.l.b16 %v596
    %v693 = vunpack.c.h.b16 %v596
    %v694 = vunpack.c.l.b16 %v597
    %v695 = vunpack.c.h.b16 %v597
    %v696 = vunpack.c.l.b16 %v598
    %v697 = vunpack.c.h.b16 %v598
    %v698 = vunpack.c.l.b16 %v599
    %v699 = vunpack.c.h.b16 %v599
    %v700 = vunpack.c.l.b16 %v600
    %v701 = vunpack.c.h.b16 %v600
    %v702 = vunpack.c.l.b16 %v601
    %v703 = vunpack.c.h.b16 %v601
    %v704 = vunpack.c.l.b16 %v602
    %v705 = vunpack.c.h.b16 %v602
    %v706 = vunpack.c.l.b16 %v603
    %v707 = vunpack.c.h.b16 %v603
    %v708 = vunpack.c.l.b16 %v604
    %v709 = vunpack.c.h.b16 %v604
    %v710 = vunpack.c.l.b16 %v605
    %v711 = vunpack.c.h.b16 %v605
    %v712 = vunpack.c.l.b16 %v606
    %v713 = vunpack.c.h.b16 %v606
    %v714 = vunpack.c.l.b16 %v607
    %v715 = vunpack.c.h.b16 %v607
    %v716 = vpack.c.b16 %v654, %v652
    %v717 = vpack.c.b16 %v655, %v653
    %v718 = vpack.c.b16 %v658, %v656
    %v719 = vpack.c.b16 %v659, %v657
    %v720 = vpack.c.b16 %v662, %v660
    %v721 = vpack.c.b16 %v663, %v661
    %v722 = vpack.c.b16 %v666, %v664
    %v723 = vpack.c.b16 %v667, %v665
    %v724 = vpack.c.b16 %v670, %v668
    %v725 = vpack.c.b16 %v671, %v669
    %v726 = vpack.c.b16 %v674, %v672
    %v727 = vpack.c.b16 %v675, %v673
    %v728 = vpack.c.b16 %v678, %v676
    %v729 = vpack.c.b16 %v679, %v677
    %v730 = vpack.c.b16 %v682, %v680
    %v731 = vpack.c.b16 %v683, %v681
    %v732 = vpack.c.b16 %v686, %v684
    %v733 = vpack.c.b16 %v687, %v685
    %v734 = vpack.c.b16 %v690, %v688
    %v735 = vpack.c.b16 %v691, %v689
    %v736 = vpack.c.b16 %v694, %v692
    %v737 = vpack.c.b16 %v695, %v693
    %v738 = vpack.c.b16 %v698, %v696
    %v739 = vpack.c.b16 %v699, %v697
    %v740 = vpack.c.b16 %v702, %v700
    %v741 = vpack.c.b16 %v703, %v701
    %v742 = vpack.c.b16 %v706, %v704
    %v743 = vpack.c.b16 %v707, %v705
    %v744 = vpack.c.b16 %v710, %v708
    %v745 = vpack.c.b16 %v711, %v709
    %v746 = vpack.c.b16 %v714, %v712
    %v747 = vpack.c.b16 %v715, %v713
    %780 = vmatprep.subr.bf16.mxu0 %v731
    %781 = vmatpush1.bf16.msra.mxu0 %v730
    %782 = vmatprep.subr.bf16.mxu0 %v729
    %783 = vmatpush1.bf16.msra.mxu0 %v728
    %784 = vmatprep.subr.bf16.mxu0 %v727
    %785 = vmatpush1.bf16.msra.mxu0 %v726
    %786 = vmatprep.subr.bf16.mxu0 %v725
    %787 = vmatpush1.bf16.msra.mxu0 %v724
    %788 = vmatprep.subr.bf16.mxu0 %v723
    %789 = vmatpush1.bf16.msra.mxu0 %v722
    %790 = vmatprep.subr.bf16.mxu0 %v721
    %791 = vmatpush1.bf16.msra.mxu0 %v720
    %792 = vmatprep.subr.bf16.mxu0 %v719
    %793 = vmatpush1.bf16.msra.mxu0 %v718
    %794 = vmatprep.subr.bf16.mxu0 %v717
    %795 = vmatpush1.bf16.msra.mxu0 %v716
    %796 = vmatprep.subr.bf16.mxu0 %v747
    %797 = vmatpush2.bf16.msra.mxu0 %v746
    %798 = vmatprep.subr.bf16.mxu0 %v745
    %799 = vmatpush2.bf16.msra.mxu0 %v744
    %800 = vmatprep.subr.bf16.mxu0 %v743
    %801 = vmatpush2.bf16.msra.mxu0 %v742
    %802 = vmatprep.subr.bf16.mxu0 %v741
    %803 = vmatpush2.bf16.msra.mxu0 %v740
    %804 = vmatprep.subr.bf16.mxu0 %v739
    %805 = vmatpush2.bf16.msra.mxu0 %v738
    %806 = vmatprep.subr.bf16.mxu0 %v737
    %807 = vmatpush2.bf16.msra.mxu0 %v736
    %808 = vmatprep.subr.bf16.mxu0 %v735
    %809 = vmatpush2.bf16.msra.mxu0 %v734
    %810 = vmatprep.subr.bf16.mxu0 %v733
    %811 = vmatpush2.bf16.msra.mxu0 %v732
    %812 = vmatprep.mubr.bf16.mxu0 %v575
    %813 = vmatmul.mubr.bf16.gmra.mxu0 %v574
    %v814 = vpop.f32.mrf.mxu0
    %v815 = vadd.f32 %v613, %v814
    %v816 = vpop.f32.mrf.mxu0
    %v817 = vadd.f32 %v617, %v816
    %v818 = vpop.f32.mrf.mxu0
    %v819 = vadd.f32 %v613, %v818
    %v820 = vpop.f32.mrf.mxu0
    %v821 = vadd.f32 %v617, %v820
    %822 = vdwg.mxu0
    %v823 = vmax.f32 %v815, 0.0
    %v824 = vmax.f32 %v817, 0.0
    %v825 = vmax.f32 %v819, 0.0
    %v826 = vmax.f32 %v821, 0.0
    %v827 = vpack.c.bf16 %v825, %v823
    %v828 = vpack.c.bf16 %v826, %v824
    %v829 = vld [vmem:[#allocation7] sm:$0xff]
    %v830 = vld [vmem:[#allocation7 + $0x8] sm:$0xff]
    %v831 = vld [vmem:[#allocation7 + $0x10] sm:$0xff]
    %v832 = vld [vmem:[#allocation7 + $0x18] sm:$0xff]
    %v833 = vld [vmem:[#allocation7 + $0x20] sm:$0xff]
    %v834 = vld [vmem:[#allocation7 + $0x28] sm:$0xff]
    %v835 = vld [vmem:[#allocation7 + $0x30] sm:$0xff]
    %v836 = vld [vmem:[#allocation7 + $0x38] sm:$0xff]
    %v837 = vld [vmem:[#allocation7 + $0x40] sm:$0xff]
    %v838 = vld [vmem:[#allocation7 + $0x48] sm:$0xff]
    %v839 = vld [vmem:[#allocation7 + $0x50] sm:$0xff]
    %v840 = vld [vmem:[#allocation7 + $0x58] sm:$0xff]
    %v841 = vld [vmem:[#allocation7 + $0x60] sm:$0xff]
    %v842 = vld [vmem:[#allocation7 + $0x68] sm:$0xff]
    %v843 = vld [vmem:[#allocation7 + $0x70] sm:$0xff]
    %v844 = vld [vmem:[#allocation7 + $0x78] sm:$0xff]
    %v845 = vld [vmem:[#allocation7 + $0x80] sm:$0xff]
    %v846 = vld [vmem:[#allocation7 + $0x88] sm:$0xff]
    %v847 = vld [vmem:[#allocation7 + $0x90] sm:$0xff]
    %v848 = vld [vmem:[#allocation7 + $0x98] sm:$0xff]
    %v849 = vld [vmem:[#allocation7 + $0xa0] sm:$0xff]
    %v850 = vld [vmem:[#allocation7 + $0xa8] sm:$0xff]
    %v851 = vld [vmem:[#allocation7 + $0xb0] sm:$0xff]
    %v852 = vld [vmem:[#allocation7 + $0xb8] sm:$0xff]
    %v853 = vld [vmem:[#allocation7 + $0xc0] sm:$0xff]
    %v854 = vld [vmem:[#allocation7 + $0xc8] sm:$0xff]
    %v855 = vld [vmem:[#allocation7 + $0xd0] sm:$0xff]
    %v856 = vld [vmem:[#allocation7 + $0xd8] sm:$0xff]
    %v857 = vld [vmem:[#allocation7 + $0xe0] sm:$0xff]
    %v858 = vld [vmem:[#allocation7 + $0xe8] sm:$0xff]
    %v859 = vld [vmem:[#allocation7 + $0xf0] sm:$0xff]
    %v860 = vld [vmem:[#allocation7 + $0xf8] sm:$0xff]
    %v861 = vld [vmem:[%s8] sm:$0x3]
    %v863 = vlaneseq
    %v864 = vshrl.u32 %v863, 7
    %v865 = vsub.s32 0, %v864
    %v866 = vrot.slane %v861, %v865
    %v867 = vlaneseq
    %v868 = vshrl.u32 %v867, 7
    %v869 = vsub.s32 1, %v868
    %v870 = vrot.slane %v861, %v869
    %v905 = vunpack.c.l.b16 %v829
    %v906 = vunpack.c.h.b16 %v829
    %v907 = vunpack.c.l.b16 %v830
    %v908 = vunpack.c.h.b16 %v830
    %v909 = vunpack.c.l.b16 %v831
    %v910 = vunpack.c.h.b16 %v831
    %v911 = vunpack.c.l.b16 %v832
    %v912 = vunpack.c.h.b16 %v832
    %v913 = vunpack.c.l.b16 %v833
    %v914 = vunpack.c.h.b16 %v833
    %v915 = vunpack.c.l.b16 %v834
    %v916 = vunpack.c.h.b16 %v834
    %v917 = vunpack.c.l.b16 %v835
    %v918 = vunpack.c.h.b16 %v835
    %v919 = vunpack.c.l.b16 %v836
    %v920 = vunpack.c.h.b16 %v836
    %v921 = vunpack.c.l.b16 %v837
    %v922 = vunpack.c.h.b16 %v837
    %v923 = vunpack.c.l.b16 %v838
    %v924 = vunpack.c.h.b16 %v838
    %v925 = vunpack.c.l.b16 %v839
    %v926 = vunpack.c.h.b16 %v839
    %v927 = vunpack.c.l.b16 %v840
    %v928 = vunpack.c.h.b16 %v840
    %v929 = vunpack.c.l.b16 %v841
    %v930 = vunpack.c.h.b16 %v841
    %v931 = vunpack.c.l.b16 %v842
    %v932 = vunpack.c.h.b16 %v842
    %v933 = vunpack.c.l.b16 %v843
    %v934 = vunpack.c.h.b16 %v843
    %v935 = vunpack.c.l.b16 %v844
    %v936 = vunpack.c.h.b16 %v844
    %v937 = vunpack.c.l.b16 %v845
    %v938 = vunpack.c.h.b16 %v845
    %v939 = vunpack.c.l.b16 %v846
    %v940 = vunpack.c.h.b16 %v846
    %v941 = vunpack.c.l.b16 %v847
    %v942 = vunpack.c.h.b16 %v847
    %v943 = vunpack.c.l.b16 %v848
    %v944 = vunpack.c.h.b16 %v848
    %v945 = vunpack.c.l.b16 %v849
    %v946 = vunpack.c.h.b16 %v849
    %v947 = vunpack.c.l.b16 %v850
    %v948 = vunpack.c.h.b16 %v850
    %v949 = vunpack.c.l.b16 %v851
    %v950 = vunpack.c.h.b16 %v851
    %v951 = vunpack.c.l.b16 %v852
    %v952 = vunpack.c.h.b16 %v852
    %v953 = vunpack.c.l.b16 %v853
    %v954 = vunpack.c.h.b16 %v853
    %v955 = vunpack.c.l.b16 %v854
    %v956 = vunpack.c.h.b16 %v854
    %v957 = vunpack.c.l.b16 %v855
    %v958 = vunpack.c.h.b16 %v855
    %v959 = vunpack.c.l.b16 %v856
    %v960 = vunpack.c.h.b16 %v856
    %v961 = vunpack.c.l.b16 %v857
    %v962 = vunpack.c.h.b16 %v857
    %v963 = vunpack.c.l.b16 %v858
    %v964 = vunpack.c.h.b16 %v858
    %v965 = vunpack.c.l.b16 %v859
    %v966 = vunpack.c.h.b16 %v859
    %v967 = vunpack.c.l.b16 %v860
    %v968 = vunpack.c.h.b16 %v860
    %v969 = vpack.c.b16 %v907, %v905
    %v970 = vpack.c.b16 %v908, %v906
    %v971 = vpack.c.b16 %v911, %v909
    %v972 = vpack.c.b16 %v912, %v910
    %v973 = vpack.c.b16 %v915, %v913
    %v974 = vpack.c.b16 %v916, %v914
    %v975 = vpack.c.b16 %v919, %v917
    %v976 = vpack.c.b16 %v920, %v918
    %v977 = vpack.c.b16 %v923, %v921
    %v978 = vpack.c.b16 %v924, %v922
    %v979 = vpack.c.b16 %v927, %v925
    %v980 = vpack.c.b16 %v928, %v926
    %v981 = vpack.c.b16 %v931, %v929
    %v982 = vpack.c.b16 %v932, %v930
    %v983 = vpack.c.b16 %v935, %v933
    %v984 = vpack.c.b16 %v936, %v934
    %v985 = vpack.c.b16 %v939, %v937
    %v986 = vpack.c.b16 %v940, %v938
    %v987 = vpack.c.b16 %v943, %v941
    %v988 = vpack.c.b16 %v944, %v942
    %v989 = vpack.c.b16 %v947, %v945
    %v990 = vpack.c.b16 %v948, %v946
    %v991 = vpack.c.b16 %v951, %v949
    %v992 = vpack.c.b16 %v952, %v950
    %v993 = vpack.c.b16 %v955, %v953
    %v994 = vpack.c.b16 %v956, %v954
    %v995 = vpack.c.b16 %v959, %v957
    %v996 = vpack.c.b16 %v960, %v958
    %v997 = vpack.c.b16 %v963, %v961
    %v998 = vpack.c.b16 %v964, %v962
    %v999 = vpack.c.b16 %v967, %v965
    %v1000 = vpack.c.b16 %v968, %v966
    %1033 = vmatprep.subr.bf16.mxu0 %v984
    %1034 = vmatpush1.bf16.msra.mxu0 %v983
    %1035 = vmatprep.subr.bf16.mxu0 %v982
    %1036 = vmatpush1.bf16.msra.mxu0 %v981
    %1037 = vmatprep.subr.bf16.mxu0 %v980
    %1038 = vmatpush1.bf16.msra.mxu0 %v979
    %1039 = vmatprep.subr.bf16.mxu0 %v978
    %1040 = vmatpush1.bf16.msra.mxu0 %v977
    %1041 = vmatprep.subr.bf16.mxu0 %v976
    %1042 = vmatpush1.bf16.msra.mxu0 %v975
    %1043 = vmatprep.subr.bf16.mxu0 %v974
    %1044 = vmatpush1.bf16.msra.mxu0 %v973
    %1045 = vmatprep.subr.bf16.mxu0 %v972
    %1046 = vmatpush1.bf16.msra.mxu0 %v971
    %1047 = vmatprep.subr.bf16.mxu0 %v970
    %1048 = vmatpush1.bf16.msra.mxu0 %v969
    %1049 = vmatprep.subr.bf16.mxu0 %v1000
    %1050 = vmatpush2.bf16.msra.mxu0 %v999
    %1051 = vmatprep.subr.bf16.mxu0 %v998
    %1052 = vmatpush2.bf16.msra.mxu0 %v997
    %1053 = vmatprep.subr.bf16.mxu0 %v996
    %1054 = vmatpush2.bf16.msra.mxu0 %v995
    %1055 = vmatprep.subr.bf16.mxu0 %v994
    %1056 = vmatpush2.bf16.msra.mxu0 %v993
    %1057 = vmatprep.subr.bf16.mxu0 %v992
    %1058 = vmatpush2.bf16.msra.mxu0 %v991
    %1059 = vmatprep.subr.bf16.mxu0 %v990
    %1060 = vmatpush2.bf16.msra.mxu0 %v989
    %1061 = vmatprep.subr.bf16.mxu0 %v988
    %1062 = vmatpush2.bf16.msra.mxu0 %v987
    %1063 = vmatprep.subr.bf16.mxu0 %v986
    %1064 = vmatpush2.bf16.msra.mxu0 %v985
    %1065 = vmatprep.mubr.bf16.mxu0 %v828
    %1066 = vmatmul.mubr.bf16.gmra.mxu0 %v827
    %v1067 = vpop.f32.mrf.mxu0
    %v1068 = vadd.f32 %v866, %v1067
    %v1069 = vpop.f32.mrf.mxu0
    %v1070 = vadd.f32 %v870, %v1069
    %v1071 = vpop.f32.mrf.mxu0
    %v1072 = vadd.f32 %v866, %v1071
    %v1073 = vpop.f32.mrf.mxu0
    %v1074 = vadd.f32 %v870, %v1073
    %1075 = vdwg.mxu0
    %v1076 = vmax.f32 %v1068, 0.0
    %v1077 = vmax.f32 %v1070, 0.0
    %v1078 = vmax.f32 %v1072, 0.0
    %v1079 = vmax.f32 %v1074, 0.0
    %v1080 = vpack.c.bf16 %v1078, %v1076
    %v1081 = vpack.c.bf16 %v1079, %v1077
    %v1082 = vld [vmem:[#allocation9] sm:$0xf]
    %v1083 = vld [vmem:[#allocation9 + $0x4] sm:$0xf]
    %v1084 = vld [vmem:[#allocation9 + $0x8] sm:$0xf]
    %v1085 = vld [vmem:[#allocation9 + $0xc] sm:$0xf]
    %v1086 = vld [vmem:[#allocation9 + $0x10] sm:$0xf]
    %v1087 = vld [vmem:[#allocation9 + $0x14] sm:$0xf]
    %v1088 = vld [vmem:[#allocation9 + $0x18] sm:$0xf]
    %v1089 = vld [vmem:[#allocation9 + $0x1c] sm:$0xf]
    %v1090 = vld [vmem:[#allocation9 + $0x20] sm:$0xf]
    %v1091 = vld [vmem:[#allocation9 + $0x24] sm:$0xf]
    %v1092 = vld [vmem:[#allocation9 + $0x28] sm:$0xf]
    %v1093 = vld [vmem:[#allocation9 + $0x2c] sm:$0xf]
    %v1094 = vld [vmem:[#allocation9 + $0x30] sm:$0xf]
    %v1095 = vld [vmem:[#allocation9 + $0x34] sm:$0xf]
    %v1096 = vld [vmem:[#allocation9 + $0x38] sm:$0xf]
    %v1097 = vld [vmem:[#allocation9 + $0x3c] sm:$0xf]
    %v1098 = vld [vmem:[#allocation9 + $0x40] sm:$0xf]
    %v1099 = vld [vmem:[#allocation9 + $0x44] sm:$0xf]
    %v1100 = vld [vmem:[#allocation9 + $0x48] sm:$0xf]
    %v1101 = vld [vmem:[#allocation9 + $0x4c] sm:$0xf]
    %v1102 = vld [vmem:[#allocation9 + $0x50] sm:$0xf]
    %v1103 = vld [vmem:[#allocation9 + $0x54] sm:$0xf]
    %v1104 = vld [vmem:[#allocation9 + $0x58] sm:$0xf]
    %v1105 = vld [vmem:[#allocation9 + $0x5c] sm:$0xf]
    %v1106 = vld [vmem:[#allocation9 + $0x60] sm:$0xf]
    %v1107 = vld [vmem:[#allocation9 + $0x64] sm:$0xf]
    %v1108 = vld [vmem:[#allocation9 + $0x68] sm:$0xf]
    %v1109 = vld [vmem:[#allocation9 + $0x6c] sm:$0xf]
    %v1110 = vld [vmem:[#allocation9 + $0x70] sm:$0xf]
    %v1111 = vld [vmem:[#allocation9 + $0x74] sm:$0xf]
    %v1112 = vld [vmem:[#allocation9 + $0x78] sm:$0xf]
    %v1113 = vld [vmem:[#allocation9 + $0x7c] sm:$0xf]
    %v1114 = vld [vmem:[%s10] sm:$0x1]
    %v1116 = vlaneseq
    %v1117 = vshrl.u32 %v1116, 7
    %v1118 = vsub.s32 0, %v1117
    %v1119 = vrot.slane %v1114, %v1118
    %v1153 = vunpack.c.l.b16 %v1082
    %v1154 = vunpack.c.l.b16 %v1083
    %v1155 = vunpack.c.l.b16 %v1084
    %v1156 = vunpack.c.l.b16 %v1085
    %v1157 = vunpack.c.l.b16 %v1086
    %v1158 = vunpack.c.l.b16 %v1087
    %v1159 = vunpack.c.l.b16 %v1088
    %v1160 = vunpack.c.l.b16 %v1089
    %v1161 = vunpack.c.l.b16 %v1090
    %v1162 = vunpack.c.l.b16 %v1091
    %v1163 = vunpack.c.l.b16 %v1092
    %v1164 = vunpack.c.l.b16 %v1093
    %v1165 = vunpack.c.l.b16 %v1094
    %v1166 = vunpack.c.l.b16 %v1095
    %v1167 = vunpack.c.l.b16 %v1096
    %v1168 = vunpack.c.l.b16 %v1097
    %v1169 = vunpack.c.l.b16 %v1098
    %v1170 = vunpack.c.l.b16 %v1099
    %v1171 = vunpack.c.l.b16 %v1100
    %v1172 = vunpack.c.l.b16 %v1101
    %v1173 = vunpack.c.l.b16 %v1102
    %v1174 = vunpack.c.l.b16 %v1103
    %v1175 = vunpack.c.l.b16 %v1104
    %v1176 = vunpack.c.l.b16 %v1105
    %v1177 = vunpack.c.l.b16 %v1106
    %v1178 = vunpack.c.l.b16 %v1107
    %v1179 = vunpack.c.l.b16 %v1108
    %v1180 = vunpack.c.l.b16 %v1109
    %v1181 = vunpack.c.l.b16 %v1110
    %v1182 = vunpack.c.l.b16 %v1111
    %v1183 = vunpack.c.l.b16 %v1112
    %v1184 = vunpack.c.l.b16 %v1113
    %v1185 = vpack.c.b16 %v1154, %v1153
    %v1186 = vpack.c.b16 %v1156, %v1155
    %v1187 = vpack.c.b16 %v1158, %v1157
    %v1188 = vpack.c.b16 %v1160, %v1159
    %v1189 = vpack.c.b16 %v1162, %v1161
    %v1190 = vpack.c.b16 %v1164, %v1163
    %v1191 = vpack.c.b16 %v1166, %v1165
    %v1192 = vpack.c.b16 %v1168, %v1167
    %v1193 = vpack.c.b16 %v1170, %v1169
    %v1194 = vpack.c.b16 %v1172, %v1171
    %v1195 = vpack.c.b16 %v1174, %v1173
    %v1196 = vpack.c.b16 %v1176, %v1175
    %v1197 = vpack.c.b16 %v1178, %v1177
    %v1198 = vpack.c.b16 %v1180, %v1179
    %v1199 = vpack.c.b16 %v1182, %v1181
    %v1200 = vpack.c.b16 %v1184, %v1183
    %1217 = vmatprep.subr.bf16.mxu0 0
    %1218 = vmatpush1.bf16.msra.mxu0 %v1192
    %1219 = vmatprep.subr.bf16.mxu0 0
    %1220 = vmatpush1.bf16.msra.mxu0 %v1191
    %1221 = vmatprep.subr.bf16.mxu0 0
    %1222 = vmatpush1.bf16.msra.mxu0 %v1190
    %1223 = vmatprep.subr.bf16.mxu0 0
    %1224 = vmatpush1.bf16.msra.mxu0 %v1189
    %1225 = vmatprep.subr.bf16.mxu0 0
    %1226 = vmatpush1.bf16.msra.mxu0 %v1188
    %1227 = vmatprep.subr.bf16.mxu0 0
    %1228 = vmatpush1.bf16.msra.mxu0 %v1187
    %1229 = vmatprep.subr.bf16.mxu0 0
    %1230 = vmatpush1.bf16.msra.mxu0 %v1186
    %1231 = vmatprep.subr.bf16.mxu0 0
    %1232 = vmatpush1.bf16.msra.mxu0 %v1185
    %1233 = vmatprep.subr.bf16.mxu0 0
    %1234 = vmatpush2.bf16.msra.mxu0 %v1200
    %1235 = vmatprep.subr.bf16.mxu0 0
    %1236 = vmatpush2.bf16.msra.mxu0 %v1199
    %1237 = vmatprep.subr.bf16.mxu0 0
    %1238 = vmatpush2.bf16.msra.mxu0 %v1198
    %1239 = vmatprep.subr.bf16.mxu0 0
    %1240 = vmatpush2.bf16.msra.mxu0 %v1197
    %1241 = vmatprep.subr.bf16.mxu0 0
    %1242 = vmatpush2.bf16.msra.mxu0 %v1196
    %1243 = vmatprep.subr.bf16.mxu0 0
    %1244 = vmatpush2.bf16.msra.mxu0 %v1195
    %1245 = vmatprep.subr.bf16.mxu0 0
    %1246 = vmatpush2.bf16.msra.mxu0 %v1194
    %1247 = vmatprep.subr.bf16.mxu0 0
    %1248 = vmatpush2.bf16.msra.mxu0 %v1193
    %1249 = vmatprep.mubr.bf16.mxu0 %v1081
    %1250 = vmatmul.mubr.bf16.gmra.mxu0 %v1080
    %v1251 = vpop.f32.mrf.mxu0
    %v1252 = vadd.f32 %v1119, %v1251
    %v1253 = vpop.f32.mrf.mxu0
    %v1254 = vpop.f32.mrf.mxu0
    %v1255 = vadd.f32 %v1119, %v1254
    %v1256 = vpop.f32.mrf.mxu0
    %1257 = vdwg.mxu0
    %v1258 = vpack.c.bf16 %v1255, %v1252
    %v1260 = vunpack.c.l.b16 %v1258
    %v1261 = vunpack.c.h.b16 %v1258
    %v1262 = vpack.c.b16 %v1260, %v1260
    %v1263 = vpack.c.b16 %v1261, %v1261
    %1266 = vst [vmem:[%s11] sm:$0xf] %v1262
    %1267 = vst [vmem:[%s11 + $0x4] sm:$0xf] %v1263
    // Predicated region
    $region66: #{my_mlp_forward.1} parent=1 // pred_check
      _
    $region67: #{my_mlp_forward.1} parent=1 // pred_check_branch
      %1269 = sbr.rel (0) target = $region69
    $region68: #{my_mlp_forward.1} parent=1 // pred_region
      _
    $region69: #{my_mlp_forward.1} parent=1 // pred_fallthru
      _
    // Predicated region
    $region70: #{my_mlp_forward.1} parent=1 // pred_check
      _
    $region71: #{my_mlp_forward.1} parent=1 // pred_check_branch
      %1271 = sbr.rel (0) target = $region73
    $region72: #{my_mlp_forward.1} parent=1 // pred_region
      _
    $region73: #{my_mlp_forward.1} parent=1 // pred_fallthru
      _
    %1272 = vsyncpa [#allocation3], 1
    %1273 = vsyncpa [#allocation5], 1
    %1274 = vsyncpa [#allocation8], 1

</llo_original>
